<compile_context>
chip_gen: v7x
topology: tpu7x:2x2x1
jax: 0.10.0
libtpu: 0.0.40
codegen_flags: <defaults>
</compile_context>

<pallas_src>
import jax
import jax.numpy as jnp
from jax import lax
from jax.experimental import pallas as pl
from jax.experimental.pallas import tpu as pltpu


def _ceil_to(a, b):
    return ((a + b - 1) // b) * b


def _vmem_capacity_bytes():
    try:
        return int(pltpu.get_tpu_info().vmem_capacity_bytes)
    except Exception:
        return 64 << 20  # conservative fallback (v7x per-TensorCore)


def _tile_targets(vmem_cap):
    # v5e/v6e (128 MiB VMEM): fat tiles amortize per-step overhead and give big
    # unmasked lane-dense stores.  v7x (64 MiB): keep 256x512 so 2-deep
    # double-buffering survives.
    if vmem_cap >= (100 << 20):
        return 512, 1024
    return 256, 512


def _footprint_bytes(tm, tn, E):
    # double-buffered f32 tiles: x (tm,E), wT (E,tn), bias (1,tn), out (tm,tn)
    return 2 * 4 * (tm * E + E * tn + tn + tm * tn)


def _pick_tm(M, tm_target):
    """Largest tm (multiple of 8, <= target) with bounded row-padding waste."""
    tm_target = max(8, (tm_target // 8) * 8)
    if M <= tm_target:
        return _ceil_to(M, 8)
    best_tm, best_waste = 8, (-M) % 8
    for tm in range(tm_target, 7, -8):
        waste = (-M) % tm
        if waste <= max(8, M // 32):
            return tm
        if waste < best_waste:
            best_tm, best_waste = tm, waste
    return best_tm


def _linear_kernel(x_ref, wt_ref, b_ref, o_ref):
    # x_ref: (tm, E), wt_ref: (E, tn) K-major (native MXU feed, no relayout),
    # b_ref: (1, tn), o_ref: (tm, tn)
    acc = lax.dot_general(
        x_ref[...], wt_ref[...],
        dimension_numbers=(((1,), (0,)), ((), ())),
        preferred_element_type=jnp.float32,
    )
    o_ref[...] = (acc + b_ref[...]).astype(o_ref.dtype)


def prepare_c_attn_params(weight, bias, *, param_dtype=None):
    """One-time (per model) param prep: K-major transpose + N-padding.

    weight: [N, E]  (PyTorch [out_features, in_features] layout), N = 16 * E
    bias:   [N]
    """
    N, E = weight.shape
    cap = _vmem_capacity_bytes()
    budget = int(cap * 0.80)
    tm_target, tn_target = _tile_targets(cap)

    tn = min(tn_target, _ceil_to(N, 128))
    while tn > 128 and _footprint_bytes(tm_target, tn, E) > budget:
        tn //= 2
    Np = _ceil_to(N, tn)

    if param_dtype is None:
        param_dtype = weight.dtype
    # TODO(synk): set param_dtype=jnp.bfloat16 on v6e/v7x to halve the dominant
    # weight HBM stream once accuracy budget allows (numerics differ from f32).
    wt = weight.astype(param_dtype).T  # (E, N): K on sublanes, N on lanes
    b = bias.astype(param_dtype)
    if Np != N:
        wt = jnp.pad(wt, ((0, 0), (0, Np - N)))
        b = jnp.pad(b, ((0, Np - N),))

    return {
        "wt": wt,                 # (E, Np) K-major, padded once (static)
        "b2d": b.reshape(1, Np),  # (1, Np)
        "n_out": N,
        "tn": tn,
        "tm_target": tm_target,
        "vmem_budget": budget,
    }


def attn_c_attn(x, params):
    """y = x @ W.T + b  (nn.Linear(E, 16E));  x: [B, S, E] -> [B, S, 16E]."""
    B, S, E = x.shape
    wt, b2d = params["wt"], params["b2d"]
    N_out, tn = params["n_out"], params["tn"]
    budget = params["vmem_budget"]
    Np = wt.shape[1]
    M = B * S

    tm = _pick_tm(M, params["tm_target"])
    while tm > 8 and _footprint_bytes(tm, tn, E) > budget:
        tm = max(8, ((tm // 2) // 8) * 8)
    Mp = _ceil_to(M, tm)

    x2d = x.reshape(M, E)
    if Mp != M:
        # _pick_tm bounds this waste; usually Mp == M and no copy happens.
        x2d = jnp.pad(x2d, ((0, Mp - M), (0, 0)))

    # N (weight) axis OUTER -> megacore split streams disjoint weight halves;
    # M axis INNER/fast -> the (E, tn) weight tile is reused with no re-DMA.
    grid = (Np // tn, Mp // tm)

    footprint = _footprint_bytes(tm, tn, E)
    vmem_limit = int(min(max(footprint + (16 << 20), 32 << 20), budget))

    cost = pl.CostEstimate(
        flops=2 * M * Np * E,
        transcendentals=0,
        bytes_accessed=4 * (M * E + Np * E + Np + M * Np),
    )

    # TODO(synk): add a trailing "arbitrary" K grid axis + f32 VMEM accumulator
    # (pl.when-gated init/finalize) once E*(tm+tn)*8B nears the VMEM budget
    # (E >~ 2-3k on v7x), instead of shrinking tiles.
    # TODO(synk): optionally pipeline_mode=pl.Buffered(3) on the x spec when the
    # per-tile compute is shorter than the x-tile DMA and VMEM headroom allows.
    out2d = pl.pallas_call(
        _linear_kernel,
        out_shape=jax.ShapeDtypeStruct((Mp, Np), x.dtype),
        grid_spec=pltpu.PrefetchScalarGridSpec(
            num_scalar_prefetch=0,
            grid=grid,
            in_specs=[
                pl.BlockSpec((tm, E), lambda j, i: (i, 0)),   # activations (fast axis)
                pl.BlockSpec((E, tn), lambda j, i: (0, j)),   # K-major weight, reused over i
                pl.BlockSpec((1, tn), lambda j, i: (0, j)),   # bias slice for this N tile
            ],
            out_specs=pl.BlockSpec((tm, tn), lambda j, i: (i, j)),
        ),
        compiler_params=pltpu.CompilerParams(
            dimension_semantics=("parallel", "parallel"),
            vmem_limit_bytes=vmem_limit,
        ),
        cost_estimate=cost,
    )(x2d, wt, b2d)

    if Mp != M or Np != N_out:
        out2d = out2d[:M, :N_out]
    return out2d.reshape(B, S, N_out)


if __name__ == "__main__":
    # Small shapes consistent with the module: embed_dim=32 -> out dim 16*32=512
    B, S, E = 2, 8, 32
    key = jax.random.PRNGKey(0)
    kx, kw, kb = jax.random.split(key, 3)

    x = jax.random.normal(kx, (B, S, E), dtype=jnp.float32)
    # Deterministic init mimicking nn.Linear's uniform(-1/sqrt(E), 1/sqrt(E))
    bound = 1.0 / (E ** 0.5)
    weight = jax.random.uniform(kw, (16 * E, E), minval=-bound, maxval=bound,
                                dtype=jnp.float32)
    bias = jax.random.uniform(kb, (16 * E,), minval=-bound, maxval=bound,
                              dtype=jnp.float32)

    params = prepare_c_attn_params(weight, bias)   # one-time static prep
    out = attn_c_attn(x, params)
    out = jax.block_until_ready(out)

    # Sanity check against plain-JAX reference
    ref = x @ weight.T + bias
    assert out.shape == (B, S, 16 * E)
    assert jnp.allclose(out, ref, atol=1e-5, rtol=1e-5)
    print("KERNEL_OK")
</pallas_src>

<mosaic_0001>
module attributes {stable_mosaic.version = 11 : i64} {
  func.func @_linear_kernel(%arg0: i32, %arg1: i32, %arg2: memref<16x32xf32, #tpu.memory_space<vmem>>, %arg3: memref<32x512xf32, #tpu.memory_space<vmem>>, %arg4: memref<1x512xf32, #tpu.memory_space<vmem>>, %arg5: memref<16x512xf32, #tpu.memory_space<vmem>>) attributes {dimension_semantics = [#tpu.dimension_semantics<parallel>, #tpu.dimension_semantics<parallel>], iteration_bounds = array<i64: 1, 1>, scalar_prefetch = 0 : i64, scratch_operands = 0 : i64, tpu.core_type = #tpu.core_type<tc>, window_params = [{transform_indices = @transform_0, window_bounds = array<i64: 16, 32>}, {transform_indices = @transform_1, window_bounds = array<i64: 32, 512>}, {transform_indices = @transform_2, window_bounds = array<i64: 1, 512>}, {transform_indices = @transform_3, window_bounds = array<i64: 16, 512>}]} {
    %c0 = arith.constant 0 : index
    %c0_0 = arith.constant 0 : index
    %0 = vector.load %arg2[%c0, %c0_0] : memref<16x32xf32, #tpu.memory_space<vmem>>, vector<16x32xf32>
    %c0_1 = arith.constant 0 : index
    %c0_2 = arith.constant 0 : index
    %1 = vector.load %arg3[%c0_1, %c0_2] : memref<32x512xf32, #tpu.memory_space<vmem>>, vector<32x512xf32>
    %cst = arith.constant dense<0.000000e+00> : vector<16x512xf32>
    %2 = tpu.matmul %0, %1, %cst {dimension_numbers = #tpu.dot_dimension_numbers<[1], [0], [0], [1], [0, 0, 1, 1], [], []>} : vector<16x32xf32>, vector<32x512xf32>, vector<16x512xf32> -> vector<16x512xf32>
    %c0_3 = arith.constant 0 : index
    %c0_4 = arith.constant 0 : index
    %3 = vector.load %arg4[%c0_3, %c0_4] : memref<1x512xf32, #tpu.memory_space<vmem>>, vector<1x512xf32>
    %4 = vector.broadcast %3 : vector<1x512xf32> to vector<16x512xf32>
    %5 = arith.addf %2, %4 : vector<16x512xf32>
    %c0_5 = arith.constant 0 : index
    %c0_6 = arith.constant 0 : index
    %6 = vector.load %arg5[%c0_5, %c0_6] : memref<16x512xf32, #tpu.memory_space<vmem>>, vector<16x512xf32>
    tpu.vector_store %arg5[%c0_5, %c0_6], %5 {strides = array<i32>} : memref<16x512xf32, #tpu.memory_space<vmem>>, vector<16x512xf32>,
    return
  }
  func.func @transform_0(%arg0: i32, %arg1: i32) -> (i32, i32) {
    %c0_i32 = arith.constant 0 : i32
    %c0_i32_0 = arith.constant 0 : i32
    return %arg1, %c0_i32 : i32, i32
  }
  func.func @transform_1(%arg0: i32, %arg1: i32) -> (i32, i32) {
    %c0_i32 = arith.constant 0 : i32
    %c0_i32_0 = arith.constant 0 : i32
    return %c0_i32, %arg0 : i32, i32
  }
  func.func @transform_2(%arg0: i32, %arg1: i32) -> (i32, i32) {
    %c0_i32 = arith.constant 0 : i32
    %c0_i32_0 = arith.constant 0 : i32
    return %c0_i32, %arg0 : i32, i32
  }
  func.func @transform_3(%arg0: i32, %arg1: i32) -> (i32, i32) {
    %c0_i32 = arith.constant 0 : i32
    return %arg1, %arg0 : i32, i32
  }
}

</mosaic_0001>

<llo_original>
// kernel: tpu_custom_call.1
$region0: #{tpu_custom_call.1}
  #allocation0 [shape = 'u32[]', space=smem, size = 0x4, offset = 0x4, fixed_abs, tag = 'smem constant byte address 0x4 - core index']
  #allocation1 [shape = 'u32[144,128]{1,0:T(1,128)}', space=vmem, size = 0x12000, scoped, tag = 'internal scratch']
  %s0 = inlined_call_operand.hbm [shape: f32[16,32], index: 0, kind: input, shape index: {}]
  %s1 = inlined_call_operand.hbm [shape: f32[32,512], index: 1, kind: input, shape index: {}]
  %s2 = inlined_call_operand.vmem [shape: f32[1,512], index: 2, kind: input, shape index: {}]
  %s3 = inlined_call_operand.hbm [shape: f32[16,512], index: 3, kind: output, shape index: {}]
  %s4 = sld [smem:[#allocation0]]
  $region30: #{tpu_custom_call.1} parent=0
    _
  %s6 = ssub.s32 1, %s4
  %s7 = scalar_select 0, %s6, %s4
  $region1: #{tpu_custom_call.1} parent=0
    #allocation2 [shape = 'u8[8192]{0}', space=vmem, size = 0x2000, scoped, tag = 'input window, operand 0, single buffered']
    #allocation3 [shape = 's32[1]{0}', space=sflag, size = 0x4, scoped, tag = 'scoped memory for tpu_custom_call.1']
    #allocation4 [shape = 's32[1]{0}', space=sflag, size = 0x4, scoped, tag = 'scoped memory for tpu_custom_call.1']
    #allocation5 [shape = 'u8[65536]{0}', space=vmem, size = 0x10000, scoped, tag = 'input window, operand 1, single buffered']
    #allocation6 [shape = 's32[1]{0}', space=sflag, size = 0x4, scoped, tag = 'scoped memory for tpu_custom_call.1']
    #allocation7 [shape = 'u8[32768]{0}', space=vmem, size = 0x8000, scoped, tag = 'output window, operand 0, single buffered']
    %8 = vsyncpa [#allocation3], 0
    %9 = vsyncpa [#allocation6], 0
    %10 = vsyncpa [#allocation4], 0
    // Predicated region
    $region2: #{tpu_custom_call.1} parent=1 // pred_check
      _
    $region3: #{tpu_custom_call.1} parent=1 // pred_check_branch
      %12 = sbr.rel (0) target = $region5
    $region4: #{tpu_custom_call.1} parent=1 // pred_region
      %s14 = ssub.s32 256, 256
      %15 = vsyncadd [#allocation3], %s14
      %s16 = sshll.u32 [#allocation2], 4
      %s17 = int_to_ptr.vmem [resolvable:$true] %s16
      %22 = dma.hbm_to_vmem [thread:$0]  %s0, 256, %s17, [#allocation3], 128, 128, 8
    $region5: #{tpu_custom_call.1} parent=1 // pred_fallthru
      _
    // Predicated region
    $region6: #{tpu_custom_call.1} parent=1 // pred_check
      _
    $region7: #{tpu_custom_call.1} parent=1 // pred_check_branch
      %24 = sbr.rel (0) target = $region9
    $region8: #{tpu_custom_call.1} parent=1 // pred_region
      %s26 = ssub.s32 2048, 2048
      %27 = vsyncadd [#allocation6], %s26
      %s28 = sshll.u32 [#allocation5], 4
      %s29 = int_to_ptr.vmem [resolvable:$true] %s28
      %34 = dma.hbm_to_vmem [thread:$0]  %s1, 2048, %s29, [#allocation6], 512, 512, 32
    $region9: #{tpu_custom_call.1} parent=1 // pred_fallthru
      _
    // Predicated region
    $region10: #{tpu_custom_call.1} parent=1 // pred_check
      _
    $region11: #{tpu_custom_call.1} parent=1 // pred_check_branch
      %36 = sbr.rel (0) target = $region13
    $region12: #{tpu_custom_call.1} parent=1 // pred_region
      _
    $region13: #{tpu_custom_call.1} parent=1 // pred_fallthru
      _
    // Predicated region
    $region14: #{tpu_custom_call.1} parent=1 // pred_check
      _
    $region15: #{tpu_custom_call.1} parent=1 // pred_check_branch
      %38 = sbr.rel (0) target = $region17
    $region16: #{tpu_custom_call.1} parent=1 // pred_region
      %39 = dma.done [#allocation3], 256
    $region17: #{tpu_custom_call.1} parent=1 // pred_fallthru
      _
    // Predicated region
    $region18: #{tpu_custom_call.1} parent=1 // pred_check
      _
    $region19: #{tpu_custom_call.1} parent=1 // pred_check_branch
      %41 = sbr.rel (0) target = $region21
    $region20: #{tpu_custom_call.1} parent=1 // pred_region
      %42 = dma.done [#allocation6], 2048
    $region21: #{tpu_custom_call.1} parent=1 // pred_fallthru
      _
    %v43 = vld [vmem:[#allocation2] sm:$0xff]
    %v44 = vld [vmem:[#allocation2 + $0x8] sm:$0xff]
    %v45 = vld [vmem:[#allocation5] sm:$0xff]
    %v46 = vld [vmem:[#allocation5 + $0x8] sm:$0xff]
    %v47 = vld [vmem:[#allocation5 + $0x10] sm:$0xff]
    %v48 = vld [vmem:[#allocation5 + $0x18] sm:$0xff]
    %v49 = vld [vmem:[#allocation5 + $0x20] sm:$0xff]
    %v50 = vld [vmem:[#allocation5 + $0x28] sm:$0xff]
    %v51 = vld [vmem:[#allocation5 + $0x30] sm:$0xff]
    %v52 = vld [vmem:[#allocation5 + $0x38] sm:$0xff]
    %v53 = vld [vmem:[#allocation5 + $0x40] sm:$0xff]
    %v54 = vld [vmem:[#allocation5 + $0x48] sm:$0xff]
    %v55 = vld [vmem:[#allocation5 + $0x50] sm:$0xff]
    %v56 = vld [vmem:[#allocation5 + $0x58] sm:$0xff]
    %v57 = vld [vmem:[#allocation5 + $0x60] sm:$0xff]
    %v58 = vld [vmem:[#allocation5 + $0x68] sm:$0xff]
    %v59 = vld [vmem:[#allocation5 + $0x70] sm:$0xff]
    %v60 = vld [vmem:[#allocation5 + $0x78] sm:$0xff]
    %v61 = vld [vmem:[%s2] sm:$0xf]
    %v63 = vlaneseq
    %v64 = vshrl.u32 %v63, 7
    %v65 = vsub.s32 0, %v64
    %v66 = vrot.slane %v61, %v65
    %v67 = vlaneseq
    %v68 = vshrl.u32 %v67, 7
    %v69 = vsub.s32 1, %v68
    %v70 = vrot.slane %v61, %v69
    %v71 = vlaneseq
    %v72 = vshrl.u32 %v71, 7
    %v73 = vsub.s32 2, %v72
    %v74 = vrot.slane %v61, %v73
    %v75 = vlaneseq
    %v76 = vshrl.u32 %v75, 7
    %v77 = vsub.s32 3, %v76
    %v78 = vrot.slane %v61, %v77
    %vm83 = vcmask 261120
    %v85 = vsel %vm83, %v43, 0
    %v88 = vsel %vm83, %v44, 0
    %90 = vmatprep.subr.mxu0 %v46
    %91 = vmatpush1.msra.mxu0 %v45
    %92 = vmatprep.subr.mxu0 %v50
    %93 = vmatpush1.msra.mxu0 %v49
    %94 = vmatprep.subr.mxu0 %v54
    %95 = vmatpush1.msra.mxu0 %v53
    %96 = vmatprep.subr.mxu0 %v58
    %97 = vmatpush1.msra.mxu0 %v57
    %98 = vmatprep.subr.mxu0 0.0
    %99 = vmatpush1.msra.mxu0 0.0
    %100 = vmatprep.subr.mxu0 0.0
    %101 = vmatpush1.msra.mxu0 0.0
    %102 = vmatprep.subr.mxu0 0.0
    %103 = vmatpush1.msra.mxu0 0.0
    %104 = vmatprep.subr.mxu0 0.0
    %105 = vmatpush1.msra.mxu0 0.0
    %106 = vmatprep.subr.mxu0 0.0
    %107 = vmatpush1.msra.mxu0 0.0
    %108 = vmatprep.subr.mxu0 0.0
    %109 = vmatpush1.msra.mxu0 0.0
    %110 = vmatprep.subr.mxu0 0.0
    %111 = vmatpush1.msra.mxu0 0.0
    %112 = vmatprep.subr.mxu0 0.0
    %113 = vmatpush1.msra.mxu0 0.0
    %114 = vmatprep.subr.mxu0 0.0
    %115 = vmatpush1.msra.mxu0 0.0
    %116 = vmatprep.subr.mxu0 0.0
    %117 = vmatpush1.msra.mxu0 0.0
    %118 = vmatprep.subr.mxu0 0.0
    %119 = vmatpush1.msra.mxu0 0.0
    %120 = vmatprep.subr.mxu0 0.0
    %121 = vmatpush1.msra.mxu0 0.0
    %122 = vmatprep.subr.mxu0 0.0
    %123 = vmatpush1.msra.mxu0 0.0
    %124 = vmatprep.subr.mxu0 0.0
    %125 = vmatpush1.msra.mxu0 0.0
    %126 = vmatprep.subr.mxu0 0.0
    %127 = vmatpush1.msra.mxu0 0.0
    %128 = vmatprep.subr.mxu0 0.0
    %129 = vmatpush1.msra.mxu0 0.0
    %130 = vmatprep.subr.mxu0 0.0
    %131 = vmatpush1.msra.mxu0 0.0
    %132 = vmatprep.subr.mxu0 0.0
    %133 = vmatpush1.msra.mxu0 0.0
    %134 = vmatprep.subr.mxu0 0.0
    %135 = vmatpush1.msra.mxu0 0.0
    %136 = vmatprep.subr.mxu0 0.0
    %137 = vmatpush1.msra.mxu0 0.0
    %138 = vmatprep.subr.mxu0 0.0
    %139 = vmatpush1.msra.mxu0 0.0
    %140 = vmatprep.subr.mxu0 0.0
    %141 = vmatpush1.msra.mxu0 0.0
    %142 = vmatprep.subr.mxu0 0.0
    %143 = vmatpush1.msra.mxu0 0.0
    %144 = vmatprep.subr.mxu0 0.0
    %145 = vmatpush1.msra.mxu0 0.0
    %146 = vmatprep.subr.mxu0 0.0
    %147 = vmatpush1.msra.mxu0 0.0
    %148 = vmatprep.subr.mxu0 0.0
    %149 = vmatpush1.msra.mxu0 0.0
    %150 = vmatprep.subr.mxu0 0.0
    %151 = vmatpush1.msra.mxu0 0.0
    %152 = vmatprep.subr.mxu0 0.0
    %153 = vmatpush1.msra.mxu0 0.0
    %154 = vmatprep.mubr.f32.mxu0 0.0
    %155 = vmatmul.mubr.f32.gmra.mrb[0].mxu0 %v85
    %v156 = vpop.f32.mrb[0].mxu0
    %v157 = vadd.f32 %v66, %v156
    %v158 = vpop.f32.mrb[0].mxu0
    %v159 = vadd.f32 %v70, %v158
    %160 = vmatprep.mubr.f32.mxu0 0.0
    %161 = vmatmul.mubr.f32.gmra.mrb[0].mxu0 %v88
    %v162 = vpop.f32.mrb[0].mxu0
    %v163 = vadd.f32 %v66, %v162
    %v164 = vpop.f32.mrb[0].mxu0
    %v165 = vadd.f32 %v70, %v164
    %166 = vdwg.mxu0
    %167 = vmatprep.subr.mxu0 %v48
    %168 = vmatpush1.msra.mxu0 %v47
    %169 = vmatprep.subr.mxu0 %v52
    %170 = vmatpush1.msra.mxu0 %v51
    %171 = vmatprep.subr.mxu0 %v56
    %172 = vmatpush1.msra.mxu0 %v55
    %173 = vmatprep.subr.mxu0 %v60
    %174 = vmatpush1.msra.mxu0 %v59
    %175 = vmatprep.subr.mxu0 0.0
    %176 = vmatpush1.msra.mxu0 0.0
    %177 = vmatprep.subr.mxu0 0.0
    %178 = vmatpush1.msra.mxu0 0.0
    %179 = vmatprep.subr.mxu0 0.0
    %180 = vmatpush1.msra.mxu0 0.0
    %181 = vmatprep.subr.mxu0 0.0
    %182 = vmatpush1.msra.mxu0 0.0
    %183 = vmatprep.subr.mxu0 0.0
    %184 = vmatpush1.msra.mxu0 0.0
    %185 = vmatprep.subr.mxu0 0.0
    %186 = vmatpush1.msra.mxu0 0.0
    %187 = vmatprep.subr.mxu0 0.0
    %188 = vmatpush1.msra.mxu0 0.0
    %189 = vmatprep.subr.mxu0 0.0
    %190 = vmatpush1.msra.mxu0 0.0
    %191 = vmatprep.subr.mxu0 0.0
    %192 = vmatpush1.msra.mxu0 0.0
    %193 = vmatprep.subr.mxu0 0.0
    %194 = vmatpush1.msra.mxu0 0.0
    %195 = vmatprep.subr.mxu0 0.0
    %196 = vmatpush1.msra.mxu0 0.0
    %197 = vmatprep.subr.mxu0 0.0
    %198 = vmatpush1.msra.mxu0 0.0
    %199 = vmatprep.subr.mxu0 0.0
    %200 = vmatpush1.msra.mxu0 0.0
    %201 = vmatprep.subr.mxu0 0.0
    %202 = vmatpush1.msra.mxu0 0.0
    %203 = vmatprep.subr.mxu0 0.0
    %204 = vmatpush1.msra.mxu0 0.0
    %205 = vmatprep.subr.mxu0 0.0
    %206 = vmatpush1.msra.mxu0 0.0
    %207 = vmatprep.subr.mxu0 0.0
    %208 = vmatpush1.msra.mxu0 0.0
    %209 = vmatprep.subr.mxu0 0.0
    %210 = vmatpush1.msra.mxu0 0.0
    %211 = vmatprep.subr.mxu0 0.0
    %212 = vmatpush1.msra.mxu0 0.0
    %213 = vmatprep.subr.mxu0 0.0
    %214 = vmatpush1.msra.mxu0 0.0
    %215 = vmatprep.subr.mxu0 0.0
    %216 = vmatpush1.msra.mxu0 0.0
    %217 = vmatprep.subr.mxu0 0.0
    %218 = vmatpush1.msra.mxu0 0.0
    %219 = vmatprep.subr.mxu0 0.0
    %220 = vmatpush1.msra.mxu0 0.0
    %221 = vmatprep.subr.mxu0 0.0
    %222 = vmatpush1.msra.mxu0 0.0
    %223 = vmatprep.subr.mxu0 0.0
    %224 = vmatpush1.msra.mxu0 0.0
    %225 = vmatprep.subr.mxu0 0.0
    %226 = vmatpush1.msra.mxu0 0.0
    %227 = vmatprep.subr.mxu0 0.0
    %228 = vmatpush1.msra.mxu0 0.0
    %229 = vmatprep.subr.mxu0 0.0
    %230 = vmatpush1.msra.mxu0 0.0
    %231 = vmatprep.mubr.f32.mxu0 0.0
    %232 = vmatmul.mubr.f32.gmra.mrb[0].mxu0 %v85
    %v233 = vpop.f32.mrb[0].mxu0
    %v234 = vadd.f32 %v74, %v233
    %v235 = vpop.f32.mrb[0].mxu0
    %v236 = vadd.f32 %v78, %v235
    %237 = vmatprep.mubr.f32.mxu0 0.0
    %238 = vmatmul.mubr.f32.gmra.mrb[0].mxu0 %v88
    %v239 = vpop.f32.mrb[0].mxu0
    %v240 = vadd.f32 %v74, %v239
    %v241 = vpop.f32.mrb[0].mxu0
    %v242 = vadd.f32 %v78, %v241
    %243 = vdwg.mxu0
    %244 = vst [vmem:[#allocation7] sm:$0xff] %v157
    %245 = vst [vmem:[#allocation7 + $0x8] sm:$0xff] %v159
    %246 = vst [vmem:[#allocation7 + $0x10] sm:$0xff] %v234
    %247 = vst [vmem:[#allocation7 + $0x18] sm:$0xff] %v236
    %248 = vst [vmem:[#allocation7 + $0x20] sm:$0xff] %v163
    %249 = vst [vmem:[#allocation7 + $0x28] sm:$0xff] %v165
    %250 = vst [vmem:[#allocation7 + $0x30] sm:$0xff] %v240
    %251 = vst [vmem:[#allocation7 + $0x38] sm:$0xff] %v242
    // Predicated region
    $region22: #{tpu_custom_call.1} parent=1 // pred_check
      _
    $region23: #{tpu_custom_call.1} parent=1 // pred_check_branch
      %253 = sbr.rel (0) target = $region25
    $region24: #{tpu_custom_call.1} parent=1 // pred_region
      %s255 = ssub.s32 1024, 1024
      %256 = vsyncadd [#allocation4], %s255
      %s257 = sshll.u32 [#allocation7], 4
      %s258 = int_to_ptr.vmem [resolvable:$true] %s257
      %263 = dma.vmem_to_hbm [thread:$0]  %s258, 1024, %s3, [#allocation4], 512, 512, 32
    $region25: #{tpu_custom_call.1} parent=1 // pred_fallthru
      _
    // Predicated region
    $region26: #{tpu_custom_call.1} parent=1 // pred_check
      _
    $region27: #{tpu_custom_call.1} parent=1 // pred_check_branch
      %265 = sbr.rel (0) target = $region29
    $region28: #{tpu_custom_call.1} parent=1 // pred_region
      %266 = dma.done [#allocation4], 1024
    $region29: #{tpu_custom_call.1} parent=1 // pred_fallthru
      _
    %267 = vsyncpa [#allocation3], 1
    %268 = vsyncpa [#allocation6], 1
    %269 = vsyncpa [#allocation4], 1

</llo_original>
